<compile_context>
chip_gen: v6e
topology: v6e:2x2x1
jax: 0.10.0
libtpu: 0.0.40
codegen_flags: <defaults>
</compile_context>

<pallas_src>
import functools

import jax
import jax.numpy as jnp
from jax.experimental import pallas as pl
from jax.experimental.pallas import tpu as pltpu

C1 = 0.01 ** 2
C2 = 0.03 ** 2

# Conservative count of live plane-sized f32 buffers per grid step (inputs,
# double-buffered pipeline blocks, output, and in-kernel temporaries).
_LIVE_MULT = 16


# ---------------------------------------------------------------------------
# Kernel
# ---------------------------------------------------------------------------
def _ssim_kernel(x_ref, y_ref, o_ref, *, h_out, w, h_halo):
    """SSIM loss map for a block of planes (or row strips).

    x_ref / y_ref: (TB, h_in, w) with h_in = h_out + 2 if h_halo else h_out.
    o_ref:         (TB, h_out, w)

    Reflection along W is always done in-kernel.  Reflection along H is done
    in-kernel when h_halo=False; otherwise the 2 halo rows are already present
    in the block.
    """
    x = x_ref[...].astype(jnp.float32)
    y = y_ref[...].astype(jnp.float32)

    # ---- 3-tap sums along W (lane axis) with in-kernel 1-px reflection ----
    # Only x and y are lane-shifted; shift(f(x)) == f(shift(x)) lets us build
    # the shifted products from the shifted operands.
    def wshift_m(a):  # value at lane j is a[..., j-1]; reflect j=0 -> a[..., 1]
        return jnp.concatenate([a[:, :, 1:2], a[:, :, : w - 1]], axis=2)

    def wshift_p(a):  # value at lane j is a[..., j+1]; reflect j=W-1 -> a[..., W-2]
        return jnp.concatenate([a[:, :, 1:], a[:, :, w - 2 : w - 1]], axis=2)

    xm, xp_ = wshift_m(x), wshift_p(x)
    ym, yp_ = wshift_m(y), wshift_p(y)

    hx = xm + x + xp_
    hy = ym + y + yp_
    hxx = xm * xm + x * x + xp_ * xp_
    hyy = ym * ym + y * y + yp_ * yp_
    hxy = xm * ym + x * y + xp_ * yp_

    # ---- 3-tap sums along H (sublane axis) ---------------------------------
    if h_halo:
        def vsum3(a):
            return a[:, 0:h_out] + a[:, 1:h_out + 1] + a[:, 2:h_out + 2]
    else:
        def vsum3(a):
            up = jnp.concatenate([a[:, 1:2], a[:, : h_out - 1]], axis=1)
            dn = jnp.concatenate([a[:, 1:], a[:, h_out - 2 : h_out - 1]], axis=1)
            return up + a + dn

    sx, sy = vsum3(hx), vsum3(hy)
    sxx, syy, sxy = vsum3(hxx), vsum3(hyy), vsum3(hxy)

    inv9 = jnp.float32(1.0 / 9.0)
    mu_x = sx * inv9
    mu_y = sy * inv9
    mu_xx = mu_x * mu_x          # CSE'd and reused below
    mu_yy = mu_y * mu_y
    mu_xy = mu_x * mu_y
    sig_x = sxx * inv9 - mu_xx
    sig_y = syy * inv9 - mu_yy
    sig_xy = sxy * inv9 - mu_xy

    ssim_n = (2.0 * mu_xy + C1) * (2.0 * sig_xy + C2)
    ssim_d = (mu_xx + mu_yy + C1) * (sig_x + sig_y + C2)

    # ssim_d >= C1*C2 > 0: EUP approx reciprocal + one Newton-Raphson step.
    r = pl.reciprocal(ssim_d, approx=True)
    r = r * (2.0 - ssim_d * r)
    out = (1.0 - ssim_n * r) * 0.5
    o_ref[...] = jnp.clip(out, 0.0, 1.0).astype(o_ref.dtype)


# ---------------------------------------------------------------------------
# Tiling heuristics
# ---------------------------------------------------------------------------
def _round_up(v, m):
    return (v + m - 1) // m * m


def _block_bytes(tb, h, w):
    # f32 VMEM footprint of one (tb, h, w) block, (8, 128)-tile padded.
    return tb * _round_up(max(h, 1), 8) * _round_up(max(w, 1), 128) * 4


def _vmem_capacity_bytes():
    # Generation-aware VMEM capacity (128 MiB v5e/v6e, 64 MiB v7x).  Fall back
    # to the conservative 64 MiB if the query is unavailable.
    try:
        cap = getattr(pltpu.get_tpu_info(), "vmem_capacity_bytes", None)
        if cap:
            return int(cap)
    except Exception:
        pass
    return 64 << 20


def _pick_tb(n_planes, unit_bytes, budget_bytes):
    """Largest divisor of n_planes that fits the budget, preferring an even
    number of grid steps (clean 2-TensorCore split on v7x) and >= 2 steps."""
    tb_max = max(1, budget_bytes // max(1, unit_bytes))
    divs = [d for d in range(1, n_planes + 1) if n_planes % d == 0 and d <= tb_max]
    if not divs:
        return 1
    even = [d for d in divs if (n_planes // d) >= 2 and (n_planes // d) % 2 == 0]
    if even:
        return max(even)
    multi = [d for d in divs if (n_planes // d) >= 2]
    if multi:
        return max(multi)
    return max(divs)


def _pick_th(h, w, budget_bytes):
    """Strip height for the row-tiled path: largest divisor of h whose halo'd
    strip fits the budget, preferring sublane-aligned heights and >= 2 strips."""
    def fits(th):
        return _block_bytes(1, th + 2, w) * _LIVE_MULT <= budget_bytes

    divs = [d for d in range(1, h + 1) if h % d == 0]
    pref = [d for d in divs if d % 8 == 0 and h // d >= 2 and fits(d)]
    if pref:
        return max(pref)
    ok = [d for d in divs if h // d >= 2 and fits(d)]
    if ok:
        return max(ok)
    ok_any = [d for d in divs if fits(d)]
    if ok_any:
        return max(ok_any)
    return 1


# ---------------------------------------------------------------------------
# Public entry point
# ---------------------------------------------------------------------------
def ssim(x, y, *, force_row_tiling=False):
    """SSIM loss map equivalent to the PyTorch SSIM module. x, y: (B, C, H, W)."""
    B, C, H, W = x.shape
    assert y.shape == x.shape
    assert H >= 2 and W >= 2, "ReflectionPad2d(1) needs spatial dims >= 2"
    N = B * C

    xs = x.reshape(N, H, W)
    ys = y.reshape(N, H, W)

    cap = _vmem_capacity_bytes()
    budget = int(cap * 0.30)       # per-grid-step compute-block budget
    vmem_limit = int(cap * 0.80)   # leave headroom for Mosaic internal scratch

    plane_unit = _block_bytes(1, H, W) * _LIVE_MULT
    use_rows = force_row_tiling or plane_unit > budget

    if not use_rows:
        # ---- Path A: whole-plane blocks, full in-kernel reflection ---------
        TB = _pick_tb(N, plane_unit, budget)
        kernel = functools.partial(_ssim_kernel, h_out=H, w=W, h_halo=False)
        out = pl.pallas_call(
            kernel,
            out_shape=jax.ShapeDtypeStruct((N, H, W), x.dtype),
            grid=(N // TB,),
            in_specs=[
                pl.BlockSpec((TB, H, W), lambda i: (i, 0, 0)),
                pl.BlockSpec((TB, H, W), lambda i: (i, 0, 0)),
            ],
            out_specs=pl.BlockSpec((TB, H, W), lambda i: (i, 0, 0)),
            compiler_params=pltpu.CompilerParams(
                dimension_semantics=("parallel",),
                vmem_limit_bytes=vmem_limit,
            ),
            cost_estimate=pl.CostEstimate(
                flops=int(N * H * W * 56),
                transcendentals=int(N * H * W),
                bytes_accessed=int(3 * N * H * W * 4),
            ),
        )(xs, ys)
        return out.reshape(B, C, H, W)

    # ---- Path B: row-tiled strips with a 2-row halo (large frames / v7x) ---
    TH = _pick_th(H, W, budget)
    n_strips = H // TH

    # Overlapped (TH + 2)-row strips from an H-only reflect pad; W stays
    # unpadded and lane-dense.  The gather materializes ~(1 + 2/TH)x the input.
    # TODO(synk): replace with element-indexed overlapping blocks or a manual
    # halo DMA so this path is copy-free too.
    rows = jnp.arange(n_strips)[:, None] * TH + jnp.arange(TH + 2)[None, :]
    xh = jnp.pad(xs, ((0, 0), (1, 1), (0, 0)), mode="reflect")[:, rows, :]
    yh = jnp.pad(ys, ((0, 0), (1, 1), (0, 0)), mode="reflect")[:, rows, :]
    # xh, yh: (N, n_strips, TH + 2, W)

    kernel = functools.partial(_ssim_kernel, h_out=TH, w=W, h_halo=True)
    out = pl.pallas_call(
        kernel,
        out_shape=jax.ShapeDtypeStruct((N, n_strips, TH, W), x.dtype),
        grid=(N, n_strips),
        in_specs=[
            pl.BlockSpec((1, None, TH + 2, W), lambda p, r: (p, r, 0, 0)),
            pl.BlockSpec((1, None, TH + 2, W), lambda p, r: (p, r, 0, 0)),
        ],
        out_specs=pl.BlockSpec((1, None, TH, W), lambda p, r: (p, r, 0, 0)),
        compiler_params=pltpu.CompilerParams(
            dimension_semantics=("parallel", "parallel"),
            vmem_limit_bytes=vmem_limit,
        ),
        cost_estimate=pl.CostEstimate(
            flops=int(N * H * W * 56),
            transcendentals=int(N * H * W),
            bytes_accessed=int((2 * N * n_strips * (TH + 2) * W + N * H * W) * 4),
        ),
    )(xh, yh)
    return out.reshape(B, C, H, W)


# ---------------------------------------------------------------------------
# Pure-JAX reference (mirrors the PyTorch module) for verification
# ---------------------------------------------------------------------------
def _ssim_reference(x, y):
    pad = ((0, 0), (0, 0), (1, 1), (1, 1))
    xp = jnp.pad(x, pad, mode="reflect")
    yp = jnp.pad(y, pad, mode="reflect")

    def avg_pool3(a):
        b, c, hp, wp = a.shape
        h, w = hp - 2, wp - 2
        s = jnp.zeros((b, c, h, w), a.dtype)
        for di in range(3):
            for dj in range(3):
                s = s + a[:, :, di:di + h, dj:dj + w]
        return s / 9.0

    mu_x = avg_pool3(xp)
    mu_y = avg_pool3(yp)
    sigma_x = avg_pool3(xp * xp) - mu_x ** 2
    sigma_y = avg_pool3(yp * yp) - mu_y ** 2
    sigma_xy = avg_pool3(xp * yp) - mu_x * mu_y
    n = (2 * mu_x * mu_y + C1) * (2 * sigma_xy + C2)
    d = (mu_x ** 2 + mu_y ** 2 + C1) * (sigma_x + sigma_y + C2)
    return jnp.clip((1 - n / d) / 2, 0.0, 1.0)


if __name__ == "__main__":
    key = jax.random.PRNGKey(0)
    kx, ky = jax.random.split(key)
    B, C, H, W = 2, 4, 16, 16
    x = jax.random.uniform(kx, (B, C, H, W), dtype=jnp.float32)
    y = jax.random.uniform(ky, (B, C, H, W), dtype=jnp.float32)

    ref = _ssim_reference(x, y)

    # Default whole-plane path (in-kernel reflection along H and W).
    out = jax.block_until_ready(ssim(x, y))
    assert out.shape == (B, C, H, W)
    assert jnp.allclose(out, ref, atol=1e-5, rtol=1e-5), "whole-plane path mismatch"

    # Also exercise the row-tiled (large-frame / v7x) path on the small shape.
    out_rt = jax.block_until_ready(ssim(x, y, force_row_tiling=True))
    assert jnp.allclose(out_rt, ref, atol=1e-5, rtol=1e-5), "row-tiled path mismatch"

    print("KERNEL_OK")
</pallas_src>

<mosaic_0001>
module attributes {stable_mosaic.version = 11 : i64} {
  func.func @_ssim_kernel(%arg0: i32, %arg1: memref<4x16x16xf32, #tpu.memory_space<vmem>>, %arg2: memref<4x16x16xf32, #tpu.memory_space<vmem>>, %arg3: memref<4x16x16xf32, #tpu.memory_space<vmem>>) attributes {dimension_semantics = [#tpu.dimension_semantics<parallel>], iteration_bounds = array<i64: 2>, scalar_prefetch = 0 : i64, scratch_operands = 0 : i64, tpu.core_type = #tpu.core_type<tc>, window_params = [{transform_indices = @transform_0, window_bounds = array<i64: 4, 16, 16>}, {transform_indices = @transform_1, window_bounds = array<i64: 4, 16, 16>}, {transform_indices = @transform_2, window_bounds = array<i64: 4, 16, 16>}]} {
    %c0 = arith.constant 0 : index
    %c0_0 = arith.constant 0 : index
    %c0_1 = arith.constant 0 : index
    %0 = vector.load %arg1[%c0, %c0_0, %c0_1] : memref<4x16x16xf32, #tpu.memory_space<vmem>>, vector<4x16x16xf32>
    %c0_2 = arith.constant 0 : index
    %c0_3 = arith.constant 0 : index
    %c0_4 = arith.constant 0 : index
    %1 = vector.load %arg2[%c0_2, %c0_3, %c0_4] : memref<4x16x16xf32, #tpu.memory_space<vmem>>, vector<4x16x16xf32>
    %2 = vector.extract_strided_slice %0 {offsets = [0, 0, 1], sizes = [4, 16, 1], strides = [1, 1, 1]} : vector<4x16x16xf32> to vector<4x16x1xf32>
    %3 = vector.extract_strided_slice %0 {offsets = [0, 0, 0], sizes = [4, 16, 15], strides = [1, 1, 1]} : vector<4x16x16xf32> to vector<4x16x15xf32>
    %4 = tpu.concatenate %2, %3 in 2 : vector<4x16x1xf32>, vector<4x16x15xf32> -> vector<4x16x16xf32>
    %5 = vector.extract_strided_slice %0 {offsets = [0, 0, 1], sizes = [4, 16, 15], strides = [1, 1, 1]} : vector<4x16x16xf32> to vector<4x16x15xf32>
    %6 = vector.extract_strided_slice %0 {offsets = [0, 0, 14], sizes = [4, 16, 1], strides = [1, 1, 1]} : vector<4x16x16xf32> to vector<4x16x1xf32>
    %7 = tpu.concatenate %5, %6 in 2 : vector<4x16x15xf32>, vector<4x16x1xf32> -> vector<4x16x16xf32>
    %8 = vector.extract_strided_slice %1 {offsets = [0, 0, 1], sizes = [4, 16, 1], strides = [1, 1, 1]} : vector<4x16x16xf32> to vector<4x16x1xf32>
    %9 = vector.extract_strided_slice %1 {offsets = [0, 0, 0], sizes = [4, 16, 15], strides = [1, 1, 1]} : vector<4x16x16xf32> to vector<4x16x15xf32>
    %10 = tpu.concatenate %8, %9 in 2 : vector<4x16x1xf32>, vector<4x16x15xf32> -> vector<4x16x16xf32>
    %11 = vector.extract_strided_slice %1 {offsets = [0, 0, 1], sizes = [4, 16, 15], strides = [1, 1, 1]} : vector<4x16x16xf32> to vector<4x16x15xf32>
    %12 = vector.extract_strided_slice %1 {offsets = [0, 0, 14], sizes = [4, 16, 1], strides = [1, 1, 1]} : vector<4x16x16xf32> to vector<4x16x1xf32>
    %13 = tpu.concatenate %11, %12 in 2 : vector<4x16x15xf32>, vector<4x16x1xf32> -> vector<4x16x16xf32>
    %14 = arith.addf %4, %0 : vector<4x16x16xf32>
    %15 = arith.addf %14, %7 : vector<4x16x16xf32>
    %16 = arith.addf %10, %1 : vector<4x16x16xf32>
    %17 = arith.addf %16, %13 : vector<4x16x16xf32>
    %18 = arith.mulf %4, %4 : vector<4x16x16xf32>
    %19 = arith.mulf %0, %0 : vector<4x16x16xf32>
    %20 = arith.addf %18, %19 : vector<4x16x16xf32>
    %21 = arith.mulf %7, %7 : vector<4x16x16xf32>
    %22 = arith.addf %20, %21 : vector<4x16x16xf32>
    %23 = arith.mulf %10, %10 : vector<4x16x16xf32>
    %24 = arith.mulf %1, %1 : vector<4x16x16xf32>
    %25 = arith.addf %23, %24 : vector<4x16x16xf32>
    %26 = arith.mulf %13, %13 : vector<4x16x16xf32>
    %27 = arith.addf %25, %26 : vector<4x16x16xf32>
    %28 = arith.mulf %4, %10 : vector<4x16x16xf32>
    %29 = arith.mulf %0, %1 : vector<4x16x16xf32>
    %30 = arith.addf %28, %29 : vector<4x16x16xf32>
    %31 = arith.mulf %7, %13 : vector<4x16x16xf32>
    %32 = arith.addf %30, %31 : vector<4x16x16xf32>
    %33 = vector.extract_strided_slice %15 {offsets = [0, 1, 0], sizes = [4, 1, 16], strides = [1, 1, 1]} : vector<4x16x16xf32> to vector<4x1x16xf32>
    %34 = vector.extract_strided_slice %15 {offsets = [0, 0, 0], sizes = [4, 15, 16], strides = [1, 1, 1]} : vector<4x16x16xf32> to vector<4x15x16xf32>
    %35 = tpu.concatenate %33, %34 in 1 : vector<4x1x16xf32>, vector<4x15x16xf32> -> vector<4x16x16xf32>
    %36 = vector.extract_strided_slice %15 {offsets = [0, 1, 0], sizes = [4, 15, 16], strides = [1, 1, 1]} : vector<4x16x16xf32> to vector<4x15x16xf32>
    %37 = vector.extract_strided_slice %15 {offsets = [0, 14, 0], sizes = [4, 1, 16], strides = [1, 1, 1]} : vector<4x16x16xf32> to vector<4x1x16xf32>
    %38 = tpu.concatenate %36, %37 in 1 : vector<4x15x16xf32>, vector<4x1x16xf32> -> vector<4x16x16xf32>
    %39 = arith.addf %35, %15 : vector<4x16x16xf32>
    %40 = arith.addf %39, %38 : vector<4x16x16xf32>
    %41 = vector.extract_strided_slice %17 {offsets = [0, 1, 0], sizes = [4, 1, 16], strides = [1, 1, 1]} : vector<4x16x16xf32> to vector<4x1x16xf32>
    %42 = vector.extract_strided_slice %17 {offsets = [0, 0, 0], sizes = [4, 15, 16], strides = [1, 1, 1]} : vector<4x16x16xf32> to vector<4x15x16xf32>
    %43 = tpu.concatenate %41, %42 in 1 : vector<4x1x16xf32>, vector<4x15x16xf32> -> vector<4x16x16xf32>
    %44 = vector.extract_strided_slice %17 {offsets = [0, 1, 0], sizes = [4, 15, 16], strides = [1, 1, 1]} : vector<4x16x16xf32> to vector<4x15x16xf32>
    %45 = vector.extract_strided_slice %17 {offsets = [0, 14, 0], sizes = [4, 1, 16], strides = [1, 1, 1]} : vector<4x16x16xf32> to vector<4x1x16xf32>
    %46 = tpu.concatenate %44, %45 in 1 : vector<4x15x16xf32>, vector<4x1x16xf32> -> vector<4x16x16xf32>
    %47 = arith.addf %43, %17 : vector<4x16x16xf32>
    %48 = arith.addf %47, %46 : vector<4x16x16xf32>
    %49 = vector.extract_strided_slice %22 {offsets = [0, 1, 0], sizes = [4, 1, 16], strides = [1, 1, 1]} : vector<4x16x16xf32> to vector<4x1x16xf32>
    %50 = vector.extract_strided_slice %22 {offsets = [0, 0, 0], sizes = [4, 15, 16], strides = [1, 1, 1]} : vector<4x16x16xf32> to vector<4x15x16xf32>
    %51 = tpu.concatenate %49, %50 in 1 : vector<4x1x16xf32>, vector<4x15x16xf32> -> vector<4x16x16xf32>
    %52 = vector.extract_strided_slice %22 {offsets = [0, 1, 0], sizes = [4, 15, 16], strides = [1, 1, 1]} : vector<4x16x16xf32> to vector<4x15x16xf32>
    %53 = vector.extract_strided_slice %22 {offsets = [0, 14, 0], sizes = [4, 1, 16], strides = [1, 1, 1]} : vector<4x16x16xf32> to vector<4x1x16xf32>
    %54 = tpu.concatenate %52, %53 in 1 : vector<4x15x16xf32>, vector<4x1x16xf32> -> vector<4x16x16xf32>
    %55 = arith.addf %51, %22 : vector<4x16x16xf32>
    %56 = arith.addf %55, %54 : vector<4x16x16xf32>
    %57 = vector.extract_strided_slice %27 {offsets = [0, 1, 0], sizes = [4, 1, 16], strides = [1, 1, 1]} : vector<4x16x16xf32> to vector<4x1x16xf32>
    %58 = vector.extract_strided_slice %27 {offsets = [0, 0, 0], sizes = [4, 15, 16], strides = [1, 1, 1]} : vector<4x16x16xf32> to vector<4x15x16xf32>
    %59 = tpu.concatenate %57, %58 in 1 : vector<4x1x16xf32>, vector<4x15x16xf32> -> vector<4x16x16xf32>
    %60 = vector.extract_strided_slice %27 {offsets = [0, 1, 0], sizes = [4, 15, 16], strides = [1, 1, 1]} : vector<4x16x16xf32> to vector<4x15x16xf32>
    %61 = vector.extract_strided_slice %27 {offsets = [0, 14, 0], sizes = [4, 1, 16], strides = [1, 1, 1]} : vector<4x16x16xf32> to vector<4x1x16xf32>
    %62 = tpu.concatenate %60, %61 in 1 : vector<4x15x16xf32>, vector<4x1x16xf32> -> vector<4x16x16xf32>
    %63 = arith.addf %59, %27 : vector<4x16x16xf32>
    %64 = arith.addf %63, %62 : vector<4x16x16xf32>
    %65 = vector.extract_strided_slice %32 {offsets = [0, 1, 0], sizes = [4, 1, 16], strides = [1, 1, 1]} : vector<4x16x16xf32> to vector<4x1x16xf32>
    %66 = vector.extract_strided_slice %32 {offsets = [0, 0, 0], sizes = [4, 15, 16], strides = [1, 1, 1]} : vector<4x16x16xf32> to vector<4x15x16xf32>
    %67 = tpu.concatenate %65, %66 in 1 : vector<4x1x16xf32>, vector<4x15x16xf32> -> vector<4x16x16xf32>
    %68 = vector.extract_strided_slice %32 {offsets = [0, 1, 0], sizes = [4, 15, 16], strides = [1, 1, 1]} : vector<4x16x16xf32> to vector<4x15x16xf32>
    %69 = vector.extract_strided_slice %32 {offsets = [0, 14, 0], sizes = [4, 1, 16], strides = [1, 1, 1]} : vector<4x16x16xf32> to vector<4x1x16xf32>
    %70 = tpu.concatenate %68, %69 in 1 : vector<4x15x16xf32>, vector<4x1x16xf32> -> vector<4x16x16xf32>
    %71 = arith.addf %67, %32 : vector<4x16x16xf32>
    %72 = arith.addf %71, %70 : vector<4x16x16xf32>
    %cst = arith.constant 0.111111112 : f32
    %73 = vector.broadcast %cst : f32 to vector<4x16x16xf32>
    %74 = arith.mulf %40, %73 : vector<4x16x16xf32>
    %cst_5 = arith.constant 0.111111112 : f32
    %75 = vector.broadcast %cst_5 : f32 to vector<4x16x16xf32>
    %76 = arith.mulf %48, %75 : vector<4x16x16xf32>
    %77 = arith.mulf %74, %74 : vector<4x16x16xf32>
    %78 = arith.mulf %76, %76 : vector<4x16x16xf32>
    %79 = arith.mulf %74, %76 : vector<4x16x16xf32>
    %cst_6 = arith.constant 0.111111112 : f32
    %80 = vector.broadcast %cst_6 : f32 to vector<4x16x16xf32>
    %81 = arith.mulf %56, %80 : vector<4x16x16xf32>
    %82 = arith.subf %81, %77 : vector<4x16x16xf32>
    %cst_7 = arith.constant 0.111111112 : f32
    %83 = vector.broadcast %cst_7 : f32 to vector<4x16x16xf32>
    %84 = arith.mulf %64, %83 : vector<4x16x16xf32>
    %85 = arith.subf %84, %78 : vector<4x16x16xf32>
    %cst_8 = arith.constant 0.111111112 : f32
    %86 = vector.broadcast %cst_8 : f32 to vector<4x16x16xf32>
    %87 = arith.mulf %72, %86 : vector<4x16x16xf32>
    %88 = arith.subf %87, %79 : vector<4x16x16xf32>
    %cst_9 = arith.constant 2.000000e+00 : f32
    %89 = vector.broadcast %cst_9 : f32 to vector<4x16x16xf32>
    %90 = arith.mulf %89, %79 : vector<4x16x16xf32>
    %cst_10 = arith.constant 9.99999974E-5 : f32
    %91 = vector.broadcast %cst_10 : f32 to vector<4x16x16xf32>
    %92 = arith.addf %90, %91 : vector<4x16x16xf32>
    %cst_11 = arith.constant 2.000000e+00 : f32
    %93 = vector.broadcast %cst_11 : f32 to vector<4x16x16xf32>
    %94 = arith.mulf %93, %88 : vector<4x16x16xf32>
    %cst_12 = arith.constant 8.99999984E-4 : f32
    %95 = vector.broadcast %cst_12 : f32 to vector<4x16x16xf32>
    %96 = arith.addf %94, %95 : vector<4x16x16xf32>
    %97 = arith.mulf %92, %96 : vector<4x16x16xf32>
    %98 = arith.addf %77, %78 : vector<4x16x16xf32>
    %cst_13 = arith.constant 9.99999974E-5 : f32
    %99 = vector.broadcast %cst_13 : f32 to vector<4x16x16xf32>
    %100 = arith.addf %98, %99 : vector<4x16x16xf32>
    %101 = arith.addf %82, %85 : vector<4x16x16xf32>
    %cst_14 = arith.constant 8.99999984E-4 : f32
    %102 = vector.broadcast %cst_14 : f32 to vector<4x16x16xf32>
    %103 = arith.addf %101, %102 : vector<4x16x16xf32>
    %104 = arith.mulf %100, %103 : vector<4x16x16xf32>
    %105 = tpu.reciprocal %104 {approx = true} : vector<4x16x16xf32> -> vector<4x16x16xf32>
    %106 = arith.mulf %104, %105 : vector<4x16x16xf32>
    %cst_15 = arith.constant 2.000000e+00 : f32
    %107 = vector.broadcast %cst_15 : f32 to vector<4x16x16xf32>
    %108 = arith.subf %107, %106 : vector<4x16x16xf32>
    %109 = arith.mulf %105, %108 : vector<4x16x16xf32>
    %110 = arith.mulf %97, %109 : vector<4x16x16xf32>
    %cst_16 = arith.constant 1.000000e+00 : f32
    %111 = vector.broadcast %cst_16 : f32 to vector<4x16x16xf32>
    %112 = arith.subf %111, %110 : vector<4x16x16xf32>
    %cst_17 = arith.constant 5.000000e-01 : f32
    %113 = vector.broadcast %cst_17 : f32 to vector<4x16x16xf32>
    %114 = arith.mulf %112, %113 : vector<4x16x16xf32>
    %cst_18 = arith.constant 0.000000e+00 : f32
    %cst_19 = arith.constant 1.000000e+00 : f32
    %115 = vector.broadcast %cst_18 : f32 to vector<4x16x16xf32>
    %116 = arith.maximumf %115, %114 : vector<4x16x16xf32>
    %117 = vector.broadcast %cst_19 : f32 to vector<4x16x16xf32>
    %118 = arith.minimumf %117, %116 : vector<4x16x16xf32>
    %c0_20 = arith.constant 0 : index
    %c0_21 = arith.constant 0 : index
    %c0_22 = arith.constant 0 : index
    %119 = vector.load %arg3[%c0_20, %c0_21, %c0_22] : memref<4x16x16xf32, #tpu.memory_space<vmem>>, vector<4x16x16xf32>
    tpu.vector_store %arg3[%c0_20, %c0_21, %c0_22], %118 {strides = array<i32>} : memref<4x16x16xf32, #tpu.memory_space<vmem>>, vector<4x16x16xf32>,
    return
  }
  func.func @transform_0(%arg0: i32) -> (i32, i32, i32) {
    %c0_i32 = arith.constant 0 : i32
    %c0_i32_0 = arith.constant 0 : i32
    %c0_i32_1 = arith.constant 0 : i32
    return %arg0, %c0_i32, %c0_i32_0 : i32, i32, i32
  }
  func.func @transform_1(%arg0: i32) -> (i32, i32, i32) {
    %c0_i32 = arith.constant 0 : i32
    %c0_i32_0 = arith.constant 0 : i32
    %c0_i32_1 = arith.constant 0 : i32
    return %arg0, %c0_i32, %c0_i32_0 : i32, i32, i32
  }
  func.func @transform_2(%arg0: i32) -> (i32, i32, i32) {
    %c0_i32 = arith.constant 0 : i32
    %c0_i32_0 = arith.constant 0 : i32
    %c0_i32_1 = arith.constant 0 : i32
    return %arg0, %c0_i32, %c0_i32_0 : i32, i32, i32
  }
}

</mosaic_0001>

<llo_original>
// kernel: tpu_custom_call.1
$region0: #{tpu_custom_call.1}
  #allocation0 [shape = 'u32[]', space=smem, size = 0x4, offset = 0x4, fixed_abs, tag = 'smem constant byte address 0x4 - core index']
  #allocation1 [shape = 'u32[144,128]{1,0:T(1,128)}', space=vmem, size = 0x12000, scoped, tag = 'internal scratch']
  %s0 = inlined_call_operand.hbm [shape: f32[8,16,16], index: 0, kind: input, shape index: {}]
  %s1 = inlined_call_operand.hbm [shape: f32[8,16,16], index: 1, kind: input, shape index: {}]
  %s2 = inlined_call_operand.hbm [shape: f32[8,16,16], index: 2, kind: output, shape index: {}]
  %s3 = sld [smem:[#allocation0]]
  $region49: #{tpu_custom_call.1} parent=0
    _
  %s5 = ssub.s32 1, %s3
  %s6 = scalar_select 0, %s5, %s3
  $region1: #{tpu_custom_call.1} parent=0
    #allocation2 [shape = 'u8[65536]{0}', space=vmem, size = 0x10000, scoped, tag = 'input window, operand 0']
    #allocation3 [shape = 's32[2]{0}', space=sflag, size = 0x8, scoped, tag = 'scoped memory for tpu_custom_call.1']
    #allocation4 [shape = 's32[2]{0}', space=sflag, size = 0x8, scoped, tag = 'scoped memory for tpu_custom_call.1']
    #allocation5 [shape = 'u8[65536]{0}', space=vmem, size = 0x10000, scoped, tag = 'input window, operand 1']
    #allocation6 [shape = 's32[2]{0}', space=sflag, size = 0x8, scoped, tag = 'scoped memory for tpu_custom_call.1']
    #allocation7 [shape = 'u8[65536]{0}', space=vmem, size = 0x10000, scoped, tag = 'output window, operand 0']
    %7 = vsyncpa [#allocation3], 0
    %s8 = scalar_lea.sflag [#allocation3], 1
    %9 = vsyncpa %s8, 0
    %10 = vsyncpa [#allocation6], 0
    %s11 = scalar_lea.sflag [#allocation6], 1
    %12 = vsyncpa %s11, 0
    %13 = vsyncpa [#allocation4], 0
    %s14 = scalar_lea.sflag [#allocation4], 1
    %15 = vsyncpa %s14, 0
    loop: start=0, step=1, limit=4
    $region2: #{tpu_custom_call.1} parent=1 // loop_pre_header
      _
    $region3: #{tpu_custom_call.1} parent=1 // loop_header
      %s17 = sphi 0, %s21
      %p18 = scmp.ge.s32.totalorder %s17, 4
      %s27 = sphi 0, %s29
      %s30 = sphi 0, %s27
      %s31 = sphi 0, %s30
      %s47 = sphi 0, %s31
      %s53 = sphi 0, %s55
      %s56 = sphi 0, %s53
      %s57 = sphi 0, %s56
      %s73 = sphi 0, %s57
      %s79 = sphi 0, %s81
      %s82 = sphi 0, %s79
      %s83 = sphi 0, %s82
      %s99 = sphi 0, %s83
    $region4: #{tpu_custom_call.1} parent=1 // loop_header_branch
      %20 = sbr.rel (%p18) target = $region8
    $region5: #{tpu_custom_call.1} parent=1 // loop_body
      %s22 = ssub.s32 %s17, 1
      %s23 = ssub.s32 %s17, 2
      %s24 = sadd.s32 %s17, 1
      %s25 = ssub.s32 %s17, %s24
      %p26 = scmp.eq.s32.totalorder %s25, 0
      %s28 = sadd.s32 %s27, 1
      %s29 = scalar_select %p26, %s27, %s28
      %p32 = pneg %p26
      %p33 = scmp.eq.s32.totalorder %s17, 1
      %p34 = por %p32, %p33
      %p35 = scmp.ne.s32.totalorder %s27, %s30
      %p36 = scmp.eq.s32.totalorder %s17, 0
      %p37 = por %p35, %p36
      %p38 = scmp.ne.s32.totalorder %s27, %s30
      %p39 = scmp.eq.s32.totalorder %s22, 1
      %p40 = por %p38, %p39
      %p41 = scmp.ne.s32.totalorder %s30, %s31
      %p42 = scmp.eq.s32.totalorder %s22, 0
      %p43 = por %p41, %p42
      %p44 = scmp.ne.s32.totalorder %s30, %s31
      %p45 = scmp.eq.s32.totalorder %s23, 1
      %p46 = por %p44, %p45
      %p48 = scmp.ne.s32.totalorder %s31, %s47
      %p49 = scmp.eq.s32.totalorder %s23, 0
      %p50 = por %p48, %p49
      %s51 = ssub.s32 %s17, %s24
      %p52 = scmp.eq.s32.totalorder %s51, 0
      %s54 = sadd.s32 %s53, 1
      %s55 = scalar_select %p52, %s53, %s54
      %p58 = pneg %p52
      %p59 = scmp.eq.s32.totalorder %s17, 1
      %p60 = por %p58, %p59
      %p61 = scmp.ne.s32.totalorder %s53, %s56
      %p62 = scmp.eq.s32.totalorder %s17, 0
      %p63 = por %p61, %p62
      %p64 = scmp.ne.s32.totalorder %s53, %s56
      %p65 = scmp.eq.s32.totalorder %s22, 1
      %p66 = por %p64, %p65
      %p67 = scmp.ne.s32.totalorder %s56, %s57
      %p68 = scmp.eq.s32.totalorder %s22, 0
      %p69 = por %p67, %p68
      %p70 = scmp.ne.s32.totalorder %s56, %s57
      %p71 = scmp.eq.s32.totalorder %s23, 1
      %p72 = por %p70, %p71
      %p74 = scmp.ne.s32.totalorder %s57, %s73
      %p75 = scmp.eq.s32.totalorder %s23, 0
      %p76 = por %p74, %p75
      %s77 = ssub.s32 %s17, %s24
      %p78 = scmp.eq.s32.totalorder %s77, 0
      %s80 = sadd.s32 %s79, 1
      %s81 = scalar_select %p78, %s79, %s80
      %p84 = pneg %p78
      %p85 = scmp.eq.s32.totalorder %s17, 1
      %p86 = por %p84, %p85
      %p87 = scmp.ne.s32.totalorder %s79, %s82
      %p88 = scmp.eq.s32.totalorder %s17, 0
      %p89 = por %p87, %p88
      %p90 = scmp.ne.s32.totalorder %s79, %s82
      %p91 = scmp.eq.s32.totalorder %s22, 1
      %p92 = por %p90, %p91
      %p93 = scmp.ne.s32.totalorder %s82, %s83
      %p94 = scmp.eq.s32.totalorder %s22, 0
      %p95 = por %p93, %p94
      %p96 = scmp.ne.s32.totalorder %s82, %s83
      %p97 = scmp.eq.s32.totalorder %s23, 1
      %p98 = por %p96, %p97
      %p100 = scmp.ne.s32.totalorder %s83, %s99
      %p101 = scmp.eq.s32.totalorder %s23, 0
      %p102 = por %p100, %p101
      %p103 = scmp.le.s32.totalorder 1, %s17
      %p104 = scmp.lt.s32.totalorder %s17, 3
      %p105 = pnand %p103, %p104
      %p106 = pneg %p105
      // Predicated region
      $region9: #{tpu_custom_call.1} parent=5 // pred_check
        _
      $region10: #{tpu_custom_call.1} parent=5 // pred_check_branch
        %108 = sbr.rel (%p105) target = $region12
      $region11: #{tpu_custom_call.1} parent=5 // pred_region
        %s109 = ssub.s32 %s17, 1
      $region12: #{tpu_custom_call.1} parent=5 // pred_fallthru
        _
      %p110 = scmp.lt.s32.totalorder %s17, 2
      // Predicated region
      $region13: #{tpu_custom_call.1} parent=5 // pred_check
        %p111 = pneg %p110
      $region14: #{tpu_custom_call.1} parent=5 // pred_check_branch
        %113 = sbr.rel (%p111) target = $region16
      $region15: #{tpu_custom_call.1} parent=5 // pred_region
        // Predicated region
        $region17: #{tpu_custom_call.1} parent=15 // pred_check
          %p114 = pneg %p37
        $region18: #{tpu_custom_call.1} parent=15 // pred_check_branch
          %116 = sbr.rel (%p114) target = $region20
        $region19: #{tpu_custom_call.1} parent=15 // pred_region
          %s117 = sand.u32 %s27, 1
          %s118 = scalar_lea.sflag [#allocation3], %s117
          %s119 = sand.u32 %s27, 1
          %s120 = smul.addr %s119, 64
          %s121 = scalar_lea.vmem [#allocation2], %s120
          %s122 = smul.u32 4, %s17
          %s124 = ssub.s32 1024, 1024
          %125 = vsyncadd %s118, %s124
          %s126 = smul.addr %s122, 2
          %s127 = smul.addr %s126, 128
          %s128 = scalar_lea.hbm %s0, %s127
          %s129 = sshll.u32 %s121, 4
          %s130 = int_to_ptr.vmem [resolvable:$true] %s129
          %135 = dma.hbm_to_vmem [thread:$0]  %s128, 1024, %s130, %s118, 128, 128, 8
        $region20: #{tpu_custom_call.1} parent=15 // pred_fallthru
          _
        // Predicated region
        $region21: #{tpu_custom_call.1} parent=15 // pred_check
          %p136 = pneg %p63
        $region22: #{tpu_custom_call.1} parent=15 // pred_check_branch
          %138 = sbr.rel (%p136) target = $region24
        $region23: #{tpu_custom_call.1} parent=15 // pred_region
          %s139 = sand.u32 %s53, 1
          %s140 = scalar_lea.sflag [#allocation6], %s139
          %s141 = sand.u32 %s53, 1
          %s142 = smul.addr %s141, 64
          %s143 = scalar_lea.vmem [#allocation5], %s142
          %s144 = smul.u32 4, %s17
          %s146 = ssub.s32 1024, 1024
          %147 = vsyncadd %s140, %s146
          %s148 = smul.addr %s144, 2
          %s149 = smul.addr %s148, 128
          %s150 = scalar_lea.hbm %s1, %s149
          %s151 = sshll.u32 %s143, 4
          %s152 = int_to_ptr.vmem [resolvable:$true] %s151
          %157 = dma.hbm_to_vmem [thread:$0]  %s150, 1024, %s152, %s140, 128, 128, 8
        $region24: #{tpu_custom_call.1} parent=15 // pred_fallthru
          _
      $region16: #{tpu_custom_call.1} parent=5 // pred_fallthru
        _
      %p158 = scmp.le.s32.totalorder 1, %s17
      %p159 = scmp.lt.s32.totalorder %s17, 3
      %p160 = pnand %p158, %p159
      %p161 = pneg %p160
      // Predicated region
      $region25: #{tpu_custom_call.1} parent=5 // pred_check
        _
      $region26: #{tpu_custom_call.1} parent=5 // pred_check_branch
        %163 = sbr.rel (%p160) target = $region28
      $region27: #{tpu_custom_call.1} parent=5 // pred_region
        %s164 = ssub.s32 %s17, 1
        %s165 = sand.u32 %s30, 1
        %s166 = scalar_lea.sflag [#allocation3], %s165
        %s167 = sand.u32 %s30, 1
        %s168 = smul.addr %s167, 64
        %s169 = scalar_lea.vmem [#allocation2], %s168
        // Predicated region
        $region29: #{tpu_custom_call.1} parent=27 // pred_check
          %p170 = pneg %p43
        $region30: #{tpu_custom_call.1} parent=27 // pred_check_branch
          %172 = sbr.rel (%p170) target = $region32
        $region31: #{tpu_custom_call.1} parent=27 // pred_region
          %173 = dma.done %s166, 1024
        $region32: #{tpu_custom_call.1} parent=27 // pred_fallthru
          _
        %s174 = sand.u32 %s56, 1
        %s175 = scalar_lea.sflag [#allocation6], %s174
        %s176 = sand.u32 %s56, 1
        %s177 = smul.addr %s176, 64
        %s178 = scalar_lea.vmem [#allocation5], %s177
        // Predicated region
        $region33: #{tpu_custom_call.1} parent=27 // pred_check
          %p179 = pneg %p69
        $region34: #{tpu_custom_call.1} parent=27 // pred_check_branch
          %181 = sbr.rel (%p179) target = $region36
        $region35: #{tpu_custom_call.1} parent=27 // pred_region
          %182 = dma.done %s175, 1024
        $region36: #{tpu_custom_call.1} parent=27 // pred_fallthru
          _
        %s183 = sand.u32 %s30, 1
        %s184 = scalar_lea.sflag [#allocation3], %s183
        %s185 = sand.u32 %s30, 1
        %s186 = smul.addr %s185, 64
        %s187 = scalar_lea.vmem [#allocation2], %s186
        %p188 = pneg %p43
        %p189 = pneg %p40
        %s190 = sand.u32 %s56, 1
        %s191 = scalar_lea.sflag [#allocation6], %s190
        %s192 = sand.u32 %s56, 1
        %s193 = smul.addr %s192, 64
        %s194 = scalar_lea.vmem [#allocation5], %s193
        %p195 = pneg %p69
        %p196 = pneg %p66
        %p197 = pneg %p95
        %p198 = pneg %p92
        %s199 = sand.u32 %s82, 1
        %s200 = scalar_lea.sflag [#allocation4], %s199
        %s201 = sand.u32 %s82, 1
        %s202 = smul.addr %s201, 64
        %s203 = scalar_lea.vmem [#allocation7], %s202
        %s204 = smul.u32 4, %s22
        %s205 = smul.u32 4, %s22
        %s206 = smul.u32 4, %s22
        %v207 = vld [vmem:[%s169] sm:$0xff]
        %v208 = vld [vmem:[%s169 + $0x8] sm:$0xff]
        %v209 = vld [vmem:[%s169 + $0x10] sm:$0xff]
        %v210 = vld [vmem:[%s169 + $0x18] sm:$0xff]
        %v211 = vld [vmem:[%s169 + $0x20] sm:$0xff]
        %v212 = vld [vmem:[%s169 + $0x28] sm:$0xff]
        %v213 = vld [vmem:[%s169 + $0x30] sm:$0xff]
        %v214 = vld [vmem:[%s169 + $0x38] sm:$0xff]
        %v215 = vld [vmem:[%s178] sm:$0xff]
        %v216 = vld [vmem:[%s178 + $0x8] sm:$0xff]
        %v217 = vld [vmem:[%s178 + $0x10] sm:$0xff]
        %v218 = vld [vmem:[%s178 + $0x18] sm:$0xff]
        %v219 = vld [vmem:[%s178 + $0x20] sm:$0xff]
        %v220 = vld [vmem:[%s178 + $0x28] sm:$0xff]
        %v221 = vld [vmem:[%s178 + $0x30] sm:$0xff]
        %v222 = vld [vmem:[%s178 + $0x38] sm:$0xff]
        %231 = vrot.lane.b32.xlu0 %v207, 127
        %v232 = vpop.permute.xlu0 %231
        %233 = vrot.lane.b32.xlu0 %v208, 127
        %v234 = vpop.permute.xlu0 %233
        %235 = vrot.lane.b32.xlu0 %v209, 127
        %v236 = vpop.permute.xlu0 %235
        %237 = vrot.lane.b32.xlu0 %v210, 127
        %v238 = vpop.permute.xlu0 %237
        %239 = vrot.lane.b32.xlu0 %v211, 127
        %v240 = vpop.permute.xlu0 %239
        %241 = vrot.lane.b32.xlu0 %v212, 127
        %v242 = vpop.permute.xlu0 %241
        %243 = vrot.lane.b32.xlu0 %v213, 127
        %v244 = vpop.permute.xlu0 %243
        %245 = vrot.lane.b32.xlu0 %v214, 127
        %v246 = vpop.permute.xlu0 %245
        %255 = vrot.lane.b32.xlu0 %v207, 1
        %v256 = vpop.permute.xlu0 %255
        %257 = vrot.lane.b32.xlu0 %v208, 1
        %v258 = vpop.permute.xlu0 %257
        %259 = vrot.lane.b32.xlu0 %v209, 1
        %v260 = vpop.permute.xlu0 %259
        %261 = vrot.lane.b32.xlu0 %v210, 1
        %v262 = vpop.permute.xlu0 %261
        %263 = vrot.lane.b32.xlu0 %v211, 1
        %v264 = vpop.permute.xlu0 %263
        %265 = vrot.lane.b32.xlu0 %v212, 1
        %v266 = vpop.permute.xlu0 %265
        %267 = vrot.lane.b32.xlu0 %v213, 1
        %v268 = vpop.permute.xlu0 %267
        %269 = vrot.lane.b32.xlu0 %v214, 1
        %v270 = vpop.permute.xlu0 %269
        %vm279 = vcmask 7168
        %v280 = vsel %vm279, %v232, %v256
        %v281 = vsel %vm279, %v234, %v258
        %v282 = vsel %vm279, %v236, %v260
        %v283 = vsel %vm279, %v238, %v262
        %v284 = vsel %vm279, %v240, %v264
        %v285 = vsel %vm279, %v242, %v266
        %v286 = vsel %vm279, %v244, %v268
        %v287 = vsel %vm279, %v246, %v270
        %vm288 = vcmask 121856
        %v289 = vsel %vm288, %v232, %v256
        %v290 = vsel %vm288, %v234, %v258
        %v291 = vsel %vm288, %v236, %v260
        %v292 = vsel %vm288, %v238, %v262
        %v293 = vsel %vm288, %v240, %v264
        %v294 = vsel %vm288, %v242, %v266
        %v295 = vsel %vm288, %v244, %v268
        %v296 = vsel %vm288, %v246, %v270
        %305 = vrot.lane.b32.xlu0 %v215, 127
        %v306 = vpop.permute.xlu0 %305
        %307 = vrot.lane.b32.xlu0 %v216, 127
        %v308 = vpop.permute.xlu0 %307
        %309 = vrot.lane.b32.xlu0 %v217, 127
        %v310 = vpop.permute.xlu0 %309
        %311 = vrot.lane.b32.xlu0 %v218, 127
        %v312 = vpop.permute.xlu0 %311
        %313 = vrot.lane.b32.xlu0 %v219, 127
        %v314 = vpop.permute.xlu0 %313
        %315 = vrot.lane.b32.xlu0 %v220, 127
        %v316 = vpop.permute.xlu0 %315
        %317 = vrot.lane.b32.xlu0 %v221, 127
        %v318 = vpop.permute.xlu0 %317
        %319 = vrot.lane.b32.xlu0 %v222, 127
        %v320 = vpop.permute.xlu0 %319
        %329 = vrot.lane.b32.xlu0 %v215, 1
        %v330 = vpop.permute.xlu0 %329
        %331 = vrot.lane.b32.xlu0 %v216, 1
        %v332 = vpop.permute.xlu0 %331
        %333 = vrot.lane.b32.xlu0 %v217, 1
        %v334 = vpop.permute.xlu0 %333
        %335 = vrot.lane.b32.xlu0 %v218, 1
        %v336 = vpop.permute.xlu0 %335
        %337 = vrot.lane.b32.xlu0 %v219, 1
        %v338 = vpop.permute.xlu0 %337
        %339 = vrot.lane.b32.xlu0 %v220, 1
        %v340 = vpop.permute.xlu0 %339
        %341 = vrot.lane.b32.xlu0 %v221, 1
        %v342 = vpop.permute.xlu0 %341
        %343 = vrot.lane.b32.xlu0 %v222, 1
        %v344 = vpop.permute.xlu0 %343
        %v353 = vsel %vm279, %v306, %v330
        %v354 = vsel %vm279, %v308, %v332
        %v355 = vsel %vm279, %v310, %v334
        %v356 = vsel %vm279, %v312, %v336
        %v357 = vsel %vm279, %v314, %v338
        %v358 = vsel %vm279, %v316, %v340
        %v359 = vsel %vm279, %v318, %v342
        %v360 = vsel %vm279, %v320, %v344
        %v361 = vsel %vm288, %v306, %v330
        %v362 = vsel %vm288, %v308, %v332
        %v363 = vsel %vm288, %v310, %v334
        %v364 = vsel %vm288, %v312, %v336
        %v365 = vsel %vm288, %v314, %v338
        %v366 = vsel %vm288, %v316, %v340
        %v367 = vsel %vm288, %v318, %v342
        %v368 = vsel %vm288, %v320, %v344
        %v369 = vadd.f32 %v280, %v207
        %v370 = vadd.f32 %v281, %v208
        %v371 = vadd.f32 %v282, %v209
        %v372 = vadd.f32 %v283, %v210
        %v373 = vadd.f32 %v284, %v211
        %v374 = vadd.f32 %v285, %v212
        %v375 = vadd.f32 %v286, %v213
        %v376 = vadd.f32 %v287, %v214
        %v377 = vadd.f32 %v369, %v289
        %v378 = vadd.f32 %v370, %v290
        %v379 = vadd.f32 %v371, %v291
        %v380 = vadd.f32 %v372, %v292
        %v381 = vadd.f32 %v373, %v293
        %v382 = vadd.f32 %v374, %v294
        %v383 = vadd.f32 %v375, %v295
        %v384 = vadd.f32 %v376, %v296
        %v385 = vadd.f32 %v353, %v215
        %v386 = vadd.f32 %v354, %v216
        %v387 = vadd.f32 %v355, %v217
        %v388 = vadd.f32 %v356, %v218
        %v389 = vadd.f32 %v357, %v219
        %v390 = vadd.f32 %v358, %v220
        %v391 = vadd.f32 %v359, %v221
        %v392 = vadd.f32 %v360, %v222
        %v393 = vadd.f32 %v385, %v361
        %v394 = vadd.f32 %v386, %v362
        %v395 = vadd.f32 %v387, %v363
        %v396 = vadd.f32 %v388, %v364
        %v397 = vadd.f32 %v389, %v365
        %v398 = vadd.f32 %v390, %v366
        %v399 = vadd.f32 %v391, %v367
        %v400 = vadd.f32 %v392, %v368
        %v401 = vmul.f32 %v280, %v280
        %v402 = vmul.f32 %v281, %v281
        %v403 = vmul.f32 %v282, %v282
        %v404 = vmul.f32 %v283, %v283
        %v405 = vmul.f32 %v284, %v284
        %v406 = vmul.f32 %v285, %v285
        %v407 = vmul.f32 %v286, %v286
        %v408 = vmul.f32 %v287, %v287
        %v409 = vmul.f32 %v207, %v207
        %v410 = vmul.f32 %v208, %v208
        %v411 = vmul.f32 %v209, %v209
        %v412 = vmul.f32 %v210, %v210
        %v413 = vmul.f32 %v211, %v211
        %v414 = vmul.f32 %v212, %v212
        %v415 = vmul.f32 %v213, %v213
        %v416 = vmul.f32 %v214, %v214
        %v417 = vadd.f32 %v401, %v409
        %v418 = vadd.f32 %v402, %v410
        %v419 = vadd.f32 %v403, %v411
        %v420 = vadd.f32 %v404, %v412
        %v421 = vadd.f32 %v405, %v413
        %v422 = vadd.f32 %v406, %v414
        %v423 = vadd.f32 %v407, %v415
        %v424 = vadd.f32 %v408, %v416
        %v425 = vmul.f32 %v289, %v289
        %v426 = vmul.f32 %v290, %v290
        %v427 = vmul.f32 %v291, %v291
        %v428 = vmul.f32 %v292, %v292
        %v429 = vmul.f32 %v293, %v293
        %v430 = vmul.f32 %v294, %v294
        %v431 = vmul.f32 %v295, %v295
        %v432 = vmul.f32 %v296, %v296
        %v433 = vadd.f32 %v417, %v425
        %v434 = vadd.f32 %v418, %v426
        %v435 = vadd.f32 %v419, %v427
        %v436 = vadd.f32 %v420, %v428
        %v437 = vadd.f32 %v421, %v429
        %v438 = vadd.f32 %v422, %v430
        %v439 = vadd.f32 %v423, %v431
        %v440 = vadd.f32 %v424, %v432
        %v441 = vmul.f32 %v353, %v353
        %v442 = vmul.f32 %v354, %v354
        %v443 = vmul.f32 %v355, %v355
        %v444 = vmul.f32 %v356, %v356
        %v445 = vmul.f32 %v357, %v357
        %v446 = vmul.f32 %v358, %v358
        %v447 = vmul.f32 %v359, %v359
        %v448 = vmul.f32 %v360, %v360
        %v449 = vmul.f32 %v215, %v215
        %v450 = vmul.f32 %v216, %v216
        %v451 = vmul.f32 %v217, %v217
        %v452 = vmul.f32 %v218, %v218
        %v453 = vmul.f32 %v219, %v219
        %v454 = vmul.f32 %v220, %v220
        %v455 = vmul.f32 %v221, %v221
        %v456 = vmul.f32 %v222, %v222
        %v457 = vadd.f32 %v441, %v449
        %v458 = vadd.f32 %v442, %v450
        %v459 = vadd.f32 %v443, %v451
        %v460 = vadd.f32 %v444, %v452
        %v461 = vadd.f32 %v445, %v453
        %v462 = vadd.f32 %v446, %v454
        %v463 = vadd.f32 %v447, %v455
        %v464 = vadd.f32 %v448, %v456
        %v465 = vmul.f32 %v361, %v361
        %v466 = vmul.f32 %v362, %v362
        %v467 = vmul.f32 %v363, %v363
        %v468 = vmul.f32 %v364, %v364
        %v469 = vmul.f32 %v365, %v365
        %v470 = vmul.f32 %v366, %v366
        %v471 = vmul.f32 %v367, %v367
        %v472 = vmul.f32 %v368, %v368
        %v473 = vadd.f32 %v457, %v465
        %v474 = vadd.f32 %v458, %v466
        %v475 = vadd.f32 %v459, %v467
        %v476 = vadd.f32 %v460, %v468
        %v477 = vadd.f32 %v461, %v469
        %v478 = vadd.f32 %v462, %v470
        %v479 = vadd.f32 %v463, %v471
        %v480 = vadd.f32 %v464, %v472
        %v481 = vmul.f32 %v280, %v353
        %v482 = vmul.f32 %v281, %v354
        %v483 = vmul.f32 %v282, %v355
        %v484 = vmul.f32 %v283, %v356
        %v485 = vmul.f32 %v284, %v357
        %v486 = vmul.f32 %v285, %v358
        %v487 = vmul.f32 %v286, %v359
        %v488 = vmul.f32 %v287, %v360
        %v489 = vmul.f32 %v207, %v215
        %v490 = vmul.f32 %v208, %v216
        %v491 = vmul.f32 %v209, %v217
        %v492 = vmul.f32 %v210, %v218
        %v493 = vmul.f32 %v211, %v219
        %v494 = vmul.f32 %v212, %v220
        %v495 = vmul.f32 %v213, %v221
        %v496 = vmul.f32 %v214, %v222
        %v497 = vadd.f32 %v481, %v489
        %v498 = vadd.f32 %v482, %v490
        %v499 = vadd.f32 %v483, %v491
        %v500 = vadd.f32 %v484, %v492
        %v501 = vadd.f32 %v485, %v493
        %v502 = vadd.f32 %v486, %v494
        %v503 = vadd.f32 %v487, %v495
        %v504 = vadd.f32 %v488, %v496
        %v505 = vmul.f32 %v289, %v361
        %v506 = vmul.f32 %v290, %v362
        %v507 = vmul.f32 %v291, %v363
        %v508 = vmul.f32 %v292, %v364
        %v509 = vmul.f32 %v293, %v365
        %v510 = vmul.f32 %v294, %v366
        %v511 = vmul.f32 %v295, %v367
        %v512 = vmul.f32 %v296, %v368
        %v513 = vadd.f32 %v497, %v505
        %v514 = vadd.f32 %v498, %v506
        %v515 = vadd.f32 %v499, %v507
        %v516 = vadd.f32 %v500, %v508
        %v517 = vadd.f32 %v501, %v509
        %v518 = vadd.f32 %v502, %v510
        %v519 = vadd.f32 %v503, %v511
        %v520 = vadd.f32 %v504, %v512
        %v525 = vrot.slane %v377, 1
        %v526 = vrot.slane %v379, 1
        %v527 = vrot.slane %v381, 1
        %v528 = vrot.slane %v383, 1
        %vm537 = vcmask 1040384
        %v538 = vrot.slane %v377, 7
        %v539 = vrot.slane %v378, 7
        %v540 = vsel %vm537, %v538, %v539
        %v541 = vrot.slane %v379, 7
        %v542 = vrot.slane %v380, 7
        %v543 = vsel %vm537, %v541, %v542
        %v544 = vrot.slane %v381, 7
        %v545 = vrot.slane %v382, 7
        %v546 = vsel %vm537, %v544, %v545
        %v547 = vrot.slane %v383, 7
        %v548 = vrot.slane %v384, 7
        %v549 = vsel %vm537, %v547, %v548
        %v558 = vsel %vm537, %v525, %v538
        %v559 = vsel %vm537, %v526, %v541
        %v560 = vsel %vm537, %v527, %v544
        %v561 = vsel %vm537, %v528, %v547
        %vm562 = vcmask 1046528
        %v563 = vrot.slane %v378, 1
        %v564 = vsel %vm562, %v525, %v563
        %v565 = vrot.slane %v380, 1
        %v566 = vsel %vm562, %v526, %v565
        %v567 = vrot.slane %v382, 1
        %v568 = vsel %vm562, %v527, %v567
        %v569 = vrot.slane %v384, 1
        %v570 = vsel %vm562, %v528, %v569
        %v583 = vsel %vm562, %v563, %v539
        %v584 = vsel %vm562, %v565, %v542
        %v585 = vsel %vm562, %v567, %v545
        %v586 = vsel %vm562, %v569, %v548
        %v587 = vadd.f32 %v558, %v377
        %v588 = vadd.f32 %v540, %v378
        %v589 = vadd.f32 %v559, %v379
        %v590 = vadd.f32 %v543, %v380
        %v591 = vadd.f32 %v560, %v381
        %v592 = vadd.f32 %v546, %v382
        %v593 = vadd.f32 %v561, %v383
        %v594 = vadd.f32 %v549, %v384
        %v595 = vadd.f32 %v587, %v564
        %v596 = vadd.f32 %v588, %v583
        %v597 = vadd.f32 %v589, %v566
        %v598 = vadd.f32 %v590, %v584
        %v599 = vadd.f32 %v591, %v568
        %v600 = vadd.f32 %v592, %v585
        %v601 = vadd.f32 %v593, %v570
        %v602 = vadd.f32 %v594, %v586
        %v607 = vrot.slane %v393, 1
        %v608 = vrot.slane %v395, 1
        %v609 = vrot.slane %v397, 1
        %v610 = vrot.slane %v399, 1
        %v619 = vrot.slane %v393, 7
        %v620 = vrot.slane %v394, 7
        %v621 = vsel %vm537, %v619, %v620
        %v622 = vrot.slane %v395, 7
        %v623 = vrot.slane %v396, 7
        %v624 = vsel %vm537, %v622, %v623
        %v625 = vrot.slane %v397, 7
        %v626 = vrot.slane %v398, 7
        %v627 = vsel %vm537, %v625, %v626
        %v628 = vrot.slane %v399, 7
        %v629 = vrot.slane %v400, 7
        %v630 = vsel %vm537, %v628, %v629
        %v639 = vsel %vm537, %v607, %v619
        %v640 = vsel %vm537, %v608, %v622
        %v641 = vsel %vm537, %v609, %v625
        %v642 = vsel %vm537, %v610, %v628
        %v643 = vrot.slane %v394, 1
        %v644 = vsel %vm562, %v607, %v643
        %v645 = vrot.slane %v396, 1
        %v646 = vsel %vm562, %v608, %v645
        %v647 = vrot.slane %v398, 1
        %v648 = vsel %vm562, %v609, %v647
        %v649 = vrot.slane %v400, 1
        %v650 = vsel %vm562, %v610, %v649
        %v663 = vsel %vm562, %v643, %v620
        %v664 = vsel %vm562, %v645, %v623
        %v665 = vsel %vm562, %v647, %v626
        %v666 = vsel %vm562, %v649, %v629
        %v667 = vadd.f32 %v639, %v393
        %v668 = vadd.f32 %v621, %v394
        %v669 = vadd.f32 %v640, %v395
        %v670 = vadd.f32 %v624, %v396
        %v671 = vadd.f32 %v641, %v397
        %v672 = vadd.f32 %v627, %v398
        %v673 = vadd.f32 %v642, %v399
        %v674 = vadd.f32 %v630, %v400
        %v675 = vadd.f32 %v667, %v644
        %v676 = vadd.f32 %v668, %v663
        %v677 = vadd.f32 %v669, %v646
        %v678 = vadd.f32 %v670, %v664
        %v679 = vadd.f32 %v671, %v648
        %v680 = vadd.f32 %v672, %v665
        %v681 = vadd.f32 %v673, %v650
        %v682 = vadd.f32 %v674, %v666
        %v687 = vrot.slane %v433, 1
        %v688 = vrot.slane %v435, 1
        %v689 = vrot.slane %v437, 1
        %v690 = vrot.slane %v439, 1
        %v699 = vrot.slane %v433, 7
        %v700 = vrot.slane %v434, 7
        %v701 = vsel %vm537, %v699, %v700
        %v702 = vrot.slane %v435, 7
        %v703 = vrot.slane %v436, 7
        %v704 = vsel %vm537, %v702, %v703
        %v705 = vrot.slane %v437, 7
        %v706 = vrot.slane %v438, 7
        %v707 = vsel %vm537, %v705, %v706
        %v708 = vrot.slane %v439, 7
        %v709 = vrot.slane %v440, 7
        %v710 = vsel %vm537, %v708, %v709
        %v719 = vsel %vm537, %v687, %v699
        %v720 = vsel %vm537, %v688, %v702
        %v721 = vsel %vm537, %v689, %v705
        %v722 = vsel %vm537, %v690, %v708
        %v723 = vrot.slane %v434, 1
        %v724 = vsel %vm562, %v687, %v723
        %v725 = vrot.slane %v436, 1
        %v726 = vsel %vm562, %v688, %v725
        %v727 = vrot.slane %v438, 1
        %v728 = vsel %vm562, %v689, %v727
        %v729 = vrot.slane %v440, 1
        %v730 = vsel %vm562, %v690, %v729
        %v743 = vsel %vm562, %v723, %v700
        %v744 = vsel %vm562, %v725, %v703
        %v745 = vsel %vm562, %v727, %v706
        %v746 = vsel %vm562, %v729, %v709
        %v747 = vadd.f32 %v719, %v433
        %v748 = vadd.f32 %v701, %v434
        %v749 = vadd.f32 %v720, %v435
        %v750 = vadd.f32 %v704, %v436
        %v751 = vadd.f32 %v721, %v437
        %v752 = vadd.f32 %v707, %v438
        %v753 = vadd.f32 %v722, %v439
        %v754 = vadd.f32 %v710, %v440
        %v755 = vadd.f32 %v747, %v724
        %v756 = vadd.f32 %v748, %v743
        %v757 = vadd.f32 %v749, %v726
        %v758 = vadd.f32 %v750, %v744
        %v759 = vadd.f32 %v751, %v728
        %v760 = vadd.f32 %v752, %v745
        %v761 = vadd.f32 %v753, %v730
        %v762 = vadd.f32 %v754, %v746
        %v767 = vrot.slane %v473, 1
        %v768 = vrot.slane %v475, 1
        %v769 = vrot.slane %v477, 1
        %v770 = vrot.slane %v479, 1
        %v779 = vrot.slane %v473, 7
        %v780 = vrot.slane %v474, 7
        %v781 = vsel %vm537, %v779, %v780
        %v782 = vrot.slane %v475, 7
        %v783 = vrot.slane %v476, 7
        %v784 = vsel %vm537, %v782, %v783
        %v785 = vrot.slane %v477, 7
        %v786 = vrot.slane %v478, 7
        %v787 = vsel %vm537, %v785, %v786
        %v788 = vrot.slane %v479, 7
        %v789 = vrot.slane %v480, 7
        %v790 = vsel %vm537, %v788, %v789
        %v799 = vsel %vm537, %v767, %v779
        %v800 = vsel %vm537, %v768, %v782
        %v801 = vsel %vm537, %v769, %v785
        %v802 = vsel %vm537, %v770, %v788
        %v803 = vrot.slane %v474, 1
        %v804 = vsel %vm562, %v767, %v803
        %v805 = vrot.slane %v476, 1
        %v806 = vsel %vm562, %v768, %v805
        %v807 = vrot.slane %v478, 1
        %v808 = vsel %vm562, %v769, %v807
        %v809 = vrot.slane %v480, 1
        %v810 = vsel %vm562, %v770, %v809
        %v823 = vsel %vm562, %v803, %v780
        %v824 = vsel %vm562, %v805, %v783
        %v825 = vsel %vm562, %v807, %v786
        %v826 = vsel %vm562, %v809, %v789
        %v827 = vadd.f32 %v799, %v473
        %v828 = vadd.f32 %v781, %v474
        %v829 = vadd.f32 %v800, %v475
        %v830 = vadd.f32 %v784, %v476
        %v831 = vadd.f32 %v801, %v477
        %v832 = vadd.f32 %v787, %v478
        %v833 = vadd.f32 %v802, %v479
        %v834 = vadd.f32 %v790, %v480
        %v835 = vadd.f32 %v827, %v804
        %v836 = vadd.f32 %v828, %v823
        %v837 = vadd.f32 %v829, %v806
        %v838 = vadd.f32 %v830, %v824
        %v839 = vadd.f32 %v831, %v808
        %v840 = vadd.f32 %v832, %v825
        %v841 = vadd.f32 %v833, %v810
        %v842 = vadd.f32 %v834, %v826
        %v847 = vrot.slane %v513, 1
        %v848 = vrot.slane %v515, 1
        %v849 = vrot.slane %v517, 1
        %v850 = vrot.slane %v519, 1
        %v859 = vrot.slane %v513, 7
        %v860 = vrot.slane %v514, 7
        %v861 = vsel %vm537, %v859, %v860
        %v862 = vrot.slane %v515, 7
        %v863 = vrot.slane %v516, 7
        %v864 = vsel %vm537, %v862, %v863
        %v865 = vrot.slane %v517, 7
        %v866 = vrot.slane %v518, 7
        %v867 = vsel %vm537, %v865, %v866
        %v868 = vrot.slane %v519, 7
        %v869 = vrot.slane %v520, 7
        %v870 = vsel %vm537, %v868, %v869
        %v879 = vsel %vm537, %v847, %v859
        %v880 = vsel %vm537, %v848, %v862
        %v881 = vsel %vm537, %v849, %v865
        %v882 = vsel %vm537, %v850, %v868
        %v883 = vrot.slane %v514, 1
        %v884 = vsel %vm562, %v847, %v883
        %v885 = vrot.slane %v516, 1
        %v886 = vsel %vm562, %v848, %v885
        %v887 = vrot.slane %v518, 1
        %v888 = vsel %vm562, %v849, %v887
        %v889 = vrot.slane %v520, 1
        %v890 = vsel %vm562, %v850, %v889
        %v903 = vsel %vm562, %v883, %v860
        %v904 = vsel %vm562, %v885, %v863
        %v905 = vsel %vm562, %v887, %v866
        %v906 = vsel %vm562, %v889, %v869
        %v907 = vadd.f32 %v879, %v513
        %v908 = vadd.f32 %v861, %v514
        %v909 = vadd.f32 %v880, %v515
        %v910 = vadd.f32 %v864, %v516
        %v911 = vadd.f32 %v881, %v517
        %v912 = vadd.f32 %v867, %v518
        %v913 = vadd.f32 %v882, %v519
        %v914 = vadd.f32 %v870, %v520
        %v915 = vadd.f32 %v907, %v884
        %v916 = vadd.f32 %v908, %v903
        %v917 = vadd.f32 %v909, %v886
        %v918 = vadd.f32 %v910, %v904
        %v919 = vadd.f32 %v911, %v888
        %v920 = vadd.f32 %v912, %v905
        %v921 = vadd.f32 %v913, %v890
        %v922 = vadd.f32 %v914, %v906
        %v923 = vmul.f32 %v595, 0.11111111
        %v924 = vmul.f32 %v596, 0.11111111
        %v925 = vmul.f32 %v597, 0.11111111
        %v926 = vmul.f32 %v598, 0.11111111
        %v927 = vmul.f32 %v599, 0.11111111
        %v928 = vmul.f32 %v600, 0.11111111
        %v929 = vmul.f32 %v601, 0.11111111
        %v930 = vmul.f32 %v602, 0.11111111
        %v931 = vmul.f32 %v675, 0.11111111
        %v932 = vmul.f32 %v676, 0.11111111
        %v933 = vmul.f32 %v677, 0.11111111
        %v934 = vmul.f32 %v678, 0.11111111
        %v935 = vmul.f32 %v679, 0.11111111
        %v936 = vmul.f32 %v680, 0.11111111
        %v937 = vmul.f32 %v681, 0.11111111
        %v938 = vmul.f32 %v682, 0.11111111
        %v939 = vmul.f32 %v923, %v923
        %v940 = vmul.f32 %v924, %v924
        %v941 = vmul.f32 %v925, %v925
        %v942 = vmul.f32 %v926, %v926
        %v943 = vmul.f32 %v927, %v927
        %v944 = vmul.f32 %v928, %v928
        %v945 = vmul.f32 %v929, %v929
        %v946 = vmul.f32 %v930, %v930
        %v947 = vmul.f32 %v931, %v931
        %v948 = vmul.f32 %v932, %v932
        %v949 = vmul.f32 %v933, %v933
        %v950 = vmul.f32 %v934, %v934
        %v951 = vmul.f32 %v935, %v935
        %v952 = vmul.f32 %v936, %v936
        %v953 = vmul.f32 %v937, %v937
        %v954 = vmul.f32 %v938, %v938
        %v955 = vmul.f32 %v923, %v931
        %v956 = vmul.f32 %v924, %v932
        %v957 = vmul.f32 %v925, %v933
        %v958 = vmul.f32 %v926, %v934
        %v959 = vmul.f32 %v927, %v935
        %v960 = vmul.f32 %v928, %v936
        %v961 = vmul.f32 %v929, %v937
        %v962 = vmul.f32 %v930, %v938
        %v963 = vmul.f32 %v755, 0.11111111
        %v964 = vmul.f32 %v756, 0.11111111
        %v965 = vmul.f32 %v757, 0.11111111
        %v966 = vmul.f32 %v758, 0.11111111
        %v967 = vmul.f32 %v759, 0.11111111
        %v968 = vmul.f32 %v760, 0.11111111
        %v969 = vmul.f32 %v761, 0.11111111
        %v970 = vmul.f32 %v762, 0.11111111
        %v971 = vsub.f32 %v963, %v939
        %v972 = vsub.f32 %v964, %v940
        %v973 = vsub.f32 %v965, %v941
        %v974 = vsub.f32 %v966, %v942
        %v975 = vsub.f32 %v967, %v943
        %v976 = vsub.f32 %v968, %v944
        %v977 = vsub.f32 %v969, %v945
        %v978 = vsub.f32 %v970, %v946
        %v979 = vmul.f32 %v835, 0.11111111
        %v980 = vmul.f32 %v836, 0.11111111
        %v981 = vmul.f32 %v837, 0.11111111
        %v982 = vmul.f32 %v838, 0.11111111
        %v983 = vmul.f32 %v839, 0.11111111
        %v984 = vmul.f32 %v840, 0.11111111
        %v985 = vmul.f32 %v841, 0.11111111
        %v986 = vmul.f32 %v842, 0.11111111
        %v987 = vsub.f32 %v979, %v947
        %v988 = vsub.f32 %v980, %v948
        %v989 = vsub.f32 %v981, %v949
        %v990 = vsub.f32 %v982, %v950
        %v991 = vsub.f32 %v983, %v951
        %v992 = vsub.f32 %v984, %v952
        %v993 = vsub.f32 %v985, %v953
        %v994 = vsub.f32 %v986, %v954
        %v995 = vmul.f32 %v915, 0.11111111
        %v996 = vmul.f32 %v916, 0.11111111
        %v997 = vmul.f32 %v917, 0.11111111
        %v998 = vmul.f32 %v918, 0.11111111
        %v999 = vmul.f32 %v919, 0.11111111
        %v1000 = vmul.f32 %v920, 0.11111111
        %v1001 = vmul.f32 %v921, 0.11111111
        %v1002 = vmul.f32 %v922, 0.11111111
        %v1003 = vsub.f32 %v995, %v955
        %v1004 = vsub.f32 %v996, %v956
        %v1005 = vsub.f32 %v997, %v957
        %v1006 = vsub.f32 %v998, %v958
        %v1007 = vsub.f32 %v999, %v959
        %v1008 = vsub.f32 %v1000, %v960
        %v1009 = vsub.f32 %v1001, %v961
        %v1010 = vsub.f32 %v1002, %v962
        %v1011 = vmul.f32 %v955, 2.0
        %v1012 = vmul.f32 %v956, 2.0
        %v1013 = vmul.f32 %v957, 2.0
        %v1014 = vmul.f32 %v958, 2.0
        %v1015 = vmul.f32 %v959, 2.0
        %v1016 = vmul.f32 %v960, 2.0
        %v1017 = vmul.f32 %v961, 2.0
        %v1018 = vmul.f32 %v962, 2.0
        %v1019 = vadd.f32 %v1011, 0.0001
        %v1020 = vadd.f32 %v1012, 0.0001
        %v1021 = vadd.f32 %v1013, 0.0001
        %v1022 = vadd.f32 %v1014, 0.0001
        %v1023 = vadd.f32 %v1015, 0.0001
        %v1024 = vadd.f32 %v1016, 0.0001
        %v1025 = vadd.f32 %v1017, 0.0001
        %v1026 = vadd.f32 %v1018, 0.0001
        %v1027 = vmul.f32 %v1003, 2.0
        %v1028 = vmul.f32 %v1004, 2.0
        %v1029 = vmul.f32 %v1005, 2.0
        %v1030 = vmul.f32 %v1006, 2.0
        %v1031 = vmul.f32 %v1007, 2.0
        %v1032 = vmul.f32 %v1008, 2.0
        %v1033 = vmul.f32 %v1009, 2.0
        %v1034 = vmul.f32 %v1010, 2.0
        %v1035 = vadd.f32 %v1027, 0.0009
        %v1036 = vadd.f32 %v1028, 0.0009
        %v1037 = vadd.f32 %v1029, 0.0009
        %v1038 = vadd.f32 %v1030, 0.0009
        %v1039 = vadd.f32 %v1031, 0.0009
        %v1040 = vadd.f32 %v1032, 0.0009
        %v1041 = vadd.f32 %v1033, 0.0009
        %v1042 = vadd.f32 %v1034, 0.0009
        %v1043 = vmul.f32 %v1019, %v1035
        %v1044 = vmul.f32 %v1020, %v1036
        %v1045 = vmul.f32 %v1021, %v1037
        %v1046 = vmul.f32 %v1022, %v1038
        %v1047 = vmul.f32 %v1023, %v1039
        %v1048 = vmul.f32 %v1024, %v1040
        %v1049 = vmul.f32 %v1025, %v1041
        %v1050 = vmul.f32 %v1026, %v1042
        %v1051 = vadd.f32 %v939, %v947
        %v1052 = vadd.f32 %v940, %v948
        %v1053 = vadd.f32 %v941, %v949
        %v1054 = vadd.f32 %v942, %v950
        %v1055 = vadd.f32 %v943, %v951
        %v1056 = vadd.f32 %v944, %v952
        %v1057 = vadd.f32 %v945, %v953
        %v1058 = vadd.f32 %v946, %v954
        %v1059 = vadd.f32 %v1051, 0.0001
        %v1060 = vadd.f32 %v1052, 0.0001
        %v1061 = vadd.f32 %v1053, 0.0001
        %v1062 = vadd.f32 %v1054, 0.0001
        %v1063 = vadd.f32 %v1055, 0.0001
        %v1064 = vadd.f32 %v1056, 0.0001
        %v1065 = vadd.f32 %v1057, 0.0001
        %v1066 = vadd.f32 %v1058, 0.0001
        %v1067 = vadd.f32 %v971, %v987
        %v1068 = vadd.f32 %v972, %v988
        %v1069 = vadd.f32 %v973, %v989
        %v1070 = vadd.f32 %v974, %v990
        %v1071 = vadd.f32 %v975, %v991
        %v1072 = vadd.f32 %v976, %v992
        %v1073 = vadd.f32 %v977, %v993
        %v1074 = vadd.f32 %v978, %v994
        %v1075 = vadd.f32 %v1067, 0.0009
        %v1076 = vadd.f32 %v1068, 0.0009
        %v1077 = vadd.f32 %v1069, 0.0009
        %v1078 = vadd.f32 %v1070, 0.0009
        %v1079 = vadd.f32 %v1071, 0.0009
        %v1080 = vadd.f32 %v1072, 0.0009
        %v1081 = vadd.f32 %v1073, 0.0009
        %v1082 = vadd.f32 %v1074, 0.0009
        %v1083 = vmul.f32 %v1059, %v1075
        %v1084 = vmul.f32 %v1060, %v1076
        %v1085 = vmul.f32 %v1061, %v1077
        %v1086 = vmul.f32 %v1062, %v1078
        %v1087 = vmul.f32 %v1063, %v1079
        %v1088 = vmul.f32 %v1064, %v1080
        %v1089 = vmul.f32 %v1065, %v1081
        %v1090 = vmul.f32 %v1066, %v1082
        %v1091 = vrcp.pop %v1083
        %v1092 = vrcp.pop %v1084
        %v1093 = vrcp.pop %v1085
        %v1094 = vrcp.pop %v1086
        %v1095 = vrcp.pop %v1087
        %v1096 = vrcp.pop %v1088
        %v1097 = vrcp.pop %v1089
        %v1098 = vrcp.pop %v1090
        %v1099 = vmul.f32 %v1083, %v1091
        %v1100 = vmul.f32 %v1084, %v1092
        %v1101 = vmul.f32 %v1085, %v1093
        %v1102 = vmul.f32 %v1086, %v1094
        %v1103 = vmul.f32 %v1087, %v1095
        %v1104 = vmul.f32 %v1088, %v1096
        %v1105 = vmul.f32 %v1089, %v1097
        %v1106 = vmul.f32 %v1090, %v1098
        %v1107 = vsub.f32 2.0, %v1099
        %v1108 = vsub.f32 2.0, %v1100
        %v1109 = vsub.f32 2.0, %v1101
        %v1110 = vsub.f32 2.0, %v1102
        %v1111 = vsub.f32 2.0, %v1103
        %v1112 = vsub.f32 2.0, %v1104
        %v1113 = vsub.f32 2.0, %v1105
        %v1114 = vsub.f32 2.0, %v1106
        %v1115 = vmul.f32 %v1091, %v1107
        %v1116 = vmul.f32 %v1092, %v1108
        %v1117 = vmul.f32 %v1093, %v1109
        %v1118 = vmul.f32 %v1094, %v1110
        %v1119 = vmul.f32 %v1095, %v1111
        %v1120 = vmul.f32 %v1096, %v1112
        %v1121 = vmul.f32 %v1097, %v1113
        %v1122 = vmul.f32 %v1098, %v1114
        %v1123 = vmul.f32 %v1043, %v1115
        %v1124 = vmul.f32 %v1044, %v1116
        %v1125 = vmul.f32 %v1045, %v1117
        %v1126 = vmul.f32 %v1046, %v1118
        %v1127 = vmul.f32 %v1047, %v1119
        %v1128 = vmul.f32 %v1048, %v1120
        %v1129 = vmul.f32 %v1049, %v1121
        %v1130 = vmul.f32 %v1050, %v1122
        %v1131 = vsub.f32 1.0, %v1123
        %v1132 = vsub.f32 1.0, %v1124
        %v1133 = vsub.f32 1.0, %v1125
        %v1134 = vsub.f32 1.0, %v1126
        %v1135 = vsub.f32 1.0, %v1127
        %v1136 = vsub.f32 1.0, %v1128
        %v1137 = vsub.f32 1.0, %v1129
        %v1138 = vsub.f32 1.0, %v1130
        %v1139 = vmul.f32 %v1131, 0.5
        %v1140 = vmul.f32 %v1132, 0.5
        %v1141 = vmul.f32 %v1133, 0.5
        %v1142 = vmul.f32 %v1134, 0.5
        %v1143 = vmul.f32 %v1135, 0.5
        %v1144 = vmul.f32 %v1136, 0.5
        %v1145 = vmul.f32 %v1137, 0.5
        %v1146 = vmul.f32 %v1138, 0.5
        %v1147 = vmax.f32 %v1139, 0.0
        %v1148 = vmax.f32 %v1140, 0.0
        %v1149 = vmax.f32 %v1141, 0.0
        %v1150 = vmax.f32 %v1142, 0.0
        %v1151 = vmax.f32 %v1143, 0.0
        %v1152 = vmax.f32 %v1144, 0.0
        %v1153 = vmax.f32 %v1145, 0.0
        %v1154 = vmax.f32 %v1146, 0.0
        %v1155 = vmin.f32 %v1147, 1.0
        %v1156 = vmin.f32 %v1148, 1.0
        %v1157 = vmin.f32 %v1149, 1.0
        %v1158 = vmin.f32 %v1150, 1.0
        %v1159 = vmin.f32 %v1151, 1.0
        %v1160 = vmin.f32 %v1152, 1.0
        %v1161 = vmin.f32 %v1153, 1.0
        %v1162 = vmin.f32 %v1154, 1.0
        %vm1163 = vcmask 130048
        %1164 = vst.msk [vmem:[%s203] sm:$0xff] %vm1163, %v1155
        %1165 = vst.msk [vmem:[%s203 + $0x8] sm:$0xff] %vm1163, %v1156
        %1166 = vst.msk [vmem:[%s203 + $0x10] sm:$0xff] %vm1163, %v1157
        %1167 = vst.msk [vmem:[%s203 + $0x18] sm:$0xff] %vm1163, %v1158
        %1168 = vst.msk [vmem:[%s203 + $0x20] sm:$0xff] %vm1163, %v1159
        %1169 = vst.msk [vmem:[%s203 + $0x28] sm:$0xff] %vm1163, %v1160
        %1170 = vst.msk [vmem:[%s203 + $0x30] sm:$0xff] %vm1163, %v1161
        %1171 = vst.msk [vmem:[%s203 + $0x38] sm:$0xff] %vm1163, %v1162
        %s1172 = sand.u32 %s82, 1
        %s1173 = scalar_lea.sflag [#allocation4], %s1172
        %s1174 = sand.u32 %s82, 1
        %s1175 = smul.addr %s1174, 64
        %s1176 = scalar_lea.vmem [#allocation7], %s1175
        // Predicated region
        $region37: #{tpu_custom_call.1} parent=27 // pred_check
          %p1177 = pneg %p92
        $region38: #{tpu_custom_call.1} parent=27 // pred_check_branch
          %1179 = sbr.rel (%p1177) target = $region40
        $region39: #{tpu_custom_call.1} parent=27 // pred_region
          %s1180 = smul.u32 4, %s22
          %s1182 = ssub.s32 1024, 1024
          %1183 = vsyncadd %s1173, %s1182
          %s1184 = smul.addr %s1180, 2
          %s1185 = smul.addr %s1184, 128
          %s1186 = scalar_lea.hbm %s2, %s1185
          %s1187 = sshll.u32 %s1176, 4
          %s1188 = int_to_ptr.vmem [resolvable:$true] %s1187
          %1193 = dma.vmem_to_hbm [thread:$0]  %s1188, 1024, %s1186, %s1173, 128, 128, 8
        $region40: #{tpu_custom_call.1} parent=27 // pred_fallthru
          _
      $region28: #{tpu_custom_call.1} parent=5 // pred_fallthru
        _
      %p1194 = scmp.le.s32.totalorder 2, %s17
      // Predicated region
      $region41: #{tpu_custom_call.1} parent=5 // pred_check
        %p1195 = pneg %p1194
      $region42: #{tpu_custom_call.1} parent=5 // pred_check_branch
        %1197 = sbr.rel (%p1195) target = $region44
      $region43: #{tpu_custom_call.1} parent=5 // pred_region
        %s1198 = ssub.s32 %s17, 2
        // Predicated region
        $region45: #{tpu_custom_call.1} parent=43 // pred_check
          %p1199 = pneg %p98
        $region46: #{tpu_custom_call.1} parent=43 // pred_check_branch
          %1201 = sbr.rel (%p1199) target = $region48
        $region47: #{tpu_custom_call.1} parent=43 // pred_region
          %s1202 = sand.u32 %s83, 1
          %s1203 = scalar_lea.sflag [#allocation4], %s1202
          %s1204 = sand.u32 %s83, 1
          %s1205 = smul.addr %s1204, 64
          %s1206 = scalar_lea.vmem [#allocation7], %s1205
          %1207 = dma.done %s1203, 1024
        $region48: #{tpu_custom_call.1} parent=43 // pred_fallthru
          _
      $region44: #{tpu_custom_call.1} parent=5 // pred_fallthru
        _
    $region6: #{tpu_custom_call.1} parent=1 // loop_footer
      %s21 = sadd.s32 1, %s17
    $region7: #{tpu_custom_call.1} parent=1 // loop_footer_branch
      %16 = sbr.rel target = $region3
    $region8: #{tpu_custom_call.1} parent=1 // loop_exit
      _
    %1208 = vsyncpa [#allocation3], 1
    %s1209 = scalar_lea.sflag [#allocation3], 1
    %1210 = vsyncpa %s1209, 1
    %1211 = vsyncpa [#allocation6], 1
    %s1212 = scalar_lea.sflag [#allocation6], 1
    %1213 = vsyncpa %s1212, 1
    %1214 = vsyncpa [#allocation4], 1
    %s1215 = scalar_lea.sflag [#allocation4], 1
    %1216 = vsyncpa %s1215, 1

</llo_original>
